<compile_context>
chip_gen: v7x
topology: tpu7x:2x2x1
jax: 0.10.0
libtpu: 0.0.40
codegen_flags: <defaults>
</compile_context>

<pallas_src>
import jax
import jax.numpy as jnp
from jax.experimental import pallas as pl
from jax.experimental.pallas import tpu as pltpu


def _concat_rows_kernel(x_ref, m_ref, o_ref):
    # x_ref: (T, F1)  m_ref: (T, F2)  o_ref: (T, F1+F2)
    # Single lane-concat in registers, then one full-tile store.
    o_ref[...] = jnp.concatenate([x_ref[...], m_ref[...]], axis=-1)


def metadata_augmentation(input_sequence: jax.Array, metadata: jax.Array,
                          *, max_tile_rows: int = 2048) -> jax.Array:
    """Pallas equivalent of MetadataAugmentation.forward: identity + identity -> concat(-1)."""
    assert input_sequence.shape[:-1] == metadata.shape[:-1], (
        "leading dims of input_sequence and metadata must match")
    assert input_sequence.dtype == metadata.dtype, (
        "input_sequence and metadata must share a dtype (torch.cat-like behavior)")

    *lead, f1 = input_sequence.shape
    f2 = metadata.shape[-1]
    f_out = f1 + f2

    rows = 1
    for d in lead:
        rows *= d

    x2 = input_sequence.reshape(rows, f1)
    m2 = metadata.reshape(rows, f2)

    # --- tile sizing: rows only (feature axes stay full-extent) ---------------
    itemsize = jnp.dtype(input_sequence.dtype).itemsize
    # Per-row VMEM bytes for one buffer set (both inputs + output), x2 for
    # double-buffering done by the Pallas pipeline.
    per_row_bytes = 2 * (f1 + f2 + f_out) * itemsize
    vmem_budget = 8 * 1024 * 1024  # conservative: fits v5e (16 MiB) and v7x (32 MiB) scoped defaults
    tile_rows = min(max_tile_rows, max(8, vmem_budget // max(per_row_bytes, 1)))
    tile_rows = (tile_rows // 8) * 8            # multiple of 8 sublanes
    if rows <= tile_rows:
        tile_rows = rows                        # full-extent block also satisfies the (8,128) rule

    grid = (pl.cdiv(rows, tile_rows),)

    out2 = pl.pallas_call(
        _concat_rows_kernel,
        out_shape=jax.ShapeDtypeStruct((rows, f_out), input_sequence.dtype),
        grid=grid,
        in_specs=[
            pl.BlockSpec((tile_rows, f1), lambda i: (i, 0)),
            pl.BlockSpec((tile_rows, f2), lambda i: (i, 0)),
        ],
        out_specs=pl.BlockSpec((tile_rows, f_out), lambda i: (i, 0)),
        compiler_params=pltpu.CompilerParams(
            dimension_semantics=("parallel",)),
    )(x2, m2)

    return out2.reshape(*lead, f_out)


if __name__ == "__main__":
    key = jax.random.PRNGKey(0)
    k1, k2 = jax.random.split(key)

    batch, seq = 2, 8
    input_features, metadata_features = 16, 8

    input_sequence = jax.random.normal(
        k1, (batch, seq, input_features), dtype=jnp.float32)
    metadata = jax.random.normal(
        k2, (batch, seq, metadata_features), dtype=jnp.float32)

    out = metadata_augmentation(input_sequence, metadata)
    out = jax.block_until_ready(out)

    # Reference check (pure JAX): identity embeddings + concat on last axis.
    ref = jnp.concatenate([input_sequence, metadata], axis=-1)
    assert out.shape == (batch, seq, input_features + metadata_features)
    assert out.dtype == input_sequence.dtype
    assert jnp.array_equal(out, ref)

    print("KERNEL_OK")
</pallas_src>

<mosaic_0001>
module attributes {stable_mosaic.version = 11 : i64} {
  func.func @_concat_rows_kernel(%arg0: i32, %arg1: memref<16x16xf32, #tpu.memory_space<vmem>>, %arg2: memref<16x8xf32, #tpu.memory_space<vmem>>, %arg3: memref<16x24xf32, #tpu.memory_space<vmem>>) attributes {dimension_semantics = [#tpu.dimension_semantics<parallel>], iteration_bounds = array<i64: 1>, scalar_prefetch = 0 : i64, scratch_operands = 0 : i64, tpu.core_type = #tpu.core_type<tc>, window_params = [{transform_indices = @transform_0, window_bounds = array<i64: 16, 16>}, {transform_indices = @transform_1, window_bounds = array<i64: 16, 8>}, {transform_indices = @transform_2, window_bounds = array<i64: 16, 24>}]} {
    %c0 = arith.constant 0 : index
    %c0_0 = arith.constant 0 : index
    %0 = vector.load %arg1[%c0, %c0_0] : memref<16x16xf32, #tpu.memory_space<vmem>>, vector<16x16xf32>
    %c0_1 = arith.constant 0 : index
    %c0_2 = arith.constant 0 : index
    %1 = vector.load %arg2[%c0_1, %c0_2] : memref<16x8xf32, #tpu.memory_space<vmem>>, vector<16x8xf32>
    %2 = tpu.concatenate %0, %1 in 1 : vector<16x16xf32>, vector<16x8xf32> -> vector<16x24xf32>
    %c0_3 = arith.constant 0 : index
    %c0_4 = arith.constant 0 : index
    %3 = vector.load %arg3[%c0_3, %c0_4] : memref<16x24xf32, #tpu.memory_space<vmem>>, vector<16x24xf32>
    tpu.vector_store %arg3[%c0_3, %c0_4], %2 {strides = array<i32>} : memref<16x24xf32, #tpu.memory_space<vmem>>, vector<16x24xf32>,
    return
  }
  func.func @transform_0(%arg0: i32) -> (i32, i32) {
    %c0_i32 = arith.constant 0 : i32
    %c0_i32_0 = arith.constant 0 : i32
    return %arg0, %c0_i32 : i32, i32
  }
  func.func @transform_1(%arg0: i32) -> (i32, i32) {
    %c0_i32 = arith.constant 0 : i32
    %c0_i32_0 = arith.constant 0 : i32
    return %arg0, %c0_i32 : i32, i32
  }
  func.func @transform_2(%arg0: i32) -> (i32, i32) {
    %c0_i32 = arith.constant 0 : i32
    %c0_i32_0 = arith.constant 0 : i32
    return %arg0, %c0_i32 : i32, i32
  }
}

</mosaic_0001>

<llo_original>
// kernel: tpu_custom_call.1
$region0: #{tpu_custom_call.1}
  #allocation0 [shape = 'u32[]', space=smem, size = 0x4, offset = 0x4, fixed_abs, tag = 'smem constant byte address 0x4 - core index']
  #allocation1 [shape = 'u32[144,128]{1,0:T(1,128)}', space=vmem, size = 0x12000, scoped, tag = 'internal scratch']
  %s0 = inlined_call_operand.vmem [shape: f32[16,16], index: 0, kind: input, shape index: {}]
  %s1 = inlined_call_operand.vmem [shape: f32[16,8], index: 1, kind: input, shape index: {}]
  %s2 = inlined_call_operand.hbm [shape: f32[16,24], index: 2, kind: output, shape index: {}]
  %s3 = sld [smem:[#allocation0]]
  $region18: #{tpu_custom_call.1} parent=0
    _
  %s5 = ssub.s32 1, %s3
  %s6 = scalar_select 0, %s5, %s3
  $region1: #{tpu_custom_call.1} parent=0
    #allocation2 [shape = 'u8[8192]{0}', space=vmem, size = 0x2000, scoped, tag = 'output window, operand 0, single buffered']
    #allocation3 [shape = 's32[1]{0}', space=sflag, size = 0x4, scoped, tag = 'scoped memory for tpu_custom_call.1']
    %7 = vsyncpa [#allocation3], 0
    // Predicated region
    $region2: #{tpu_custom_call.1} parent=1 // pred_check
      _
    $region3: #{tpu_custom_call.1} parent=1 // pred_check_branch
      %9 = sbr.rel (0) target = $region5
    $region4: #{tpu_custom_call.1} parent=1 // pred_region
      _
    $region5: #{tpu_custom_call.1} parent=1 // pred_fallthru
      _
    // Predicated region
    $region6: #{tpu_custom_call.1} parent=1 // pred_check
      _
    $region7: #{tpu_custom_call.1} parent=1 // pred_check_branch
      %11 = sbr.rel (0) target = $region9
    $region8: #{tpu_custom_call.1} parent=1 // pred_region
      _
    $region9: #{tpu_custom_call.1} parent=1 // pred_fallthru
      _
    %v12 = vld [vmem:[%s0] sm:$0xff]
    %v13 = vld [vmem:[%s0 + $0x8] sm:$0xff]
    %v14 = vld [vmem:[%s1] sm:$0xff]
    %v15 = vld [vmem:[%s1 + $0x8] sm:$0xff]
    %18 = vrot.lane.b32.xlu0 %v14, 16
    %v19 = vpop.permute.xlu0 %18
    %20 = vrot.lane.b32.xlu0 %v15, 16
    %v21 = vpop.permute.xlu0 %20
    %vm24 = vcmask 130048
    %v25 = vsel %vm24, %v12, %v19
    %v26 = vsel %vm24, %v13, %v21
    %vm27 = vcmask 195584
    %28 = vst.msk [vmem:[#allocation2] sm:$0xff] %vm27, %v25
    %29 = vst.msk [vmem:[#allocation2 + $0x8] sm:$0xff] %vm27, %v26
    // Predicated region
    $region10: #{tpu_custom_call.1} parent=1 // pred_check
      _
    $region11: #{tpu_custom_call.1} parent=1 // pred_check_branch
      %31 = sbr.rel (0) target = $region13
    $region12: #{tpu_custom_call.1} parent=1 // pred_region
      %s33 = ssub.s32 256, 256
      %34 = vsyncadd [#allocation3], %s33
      %s35 = sshll.u32 [#allocation2], 4
      %s36 = int_to_ptr.vmem [resolvable:$true] %s35
      %41 = dma.vmem_to_hbm [thread:$0]  %s36, 256, %s2, [#allocation3], 128, 128, 8
    $region13: #{tpu_custom_call.1} parent=1 // pred_fallthru
      _
    // Predicated region
    $region14: #{tpu_custom_call.1} parent=1 // pred_check
      _
    $region15: #{tpu_custom_call.1} parent=1 // pred_check_branch
      %43 = sbr.rel (0) target = $region17
    $region16: #{tpu_custom_call.1} parent=1 // pred_region
      %44 = dma.done [#allocation3], 256
    $region17: #{tpu_custom_call.1} parent=1 // pred_fallthru
      _
    %45 = vsyncpa [#allocation3], 1

</llo_original>
